<compile_context>
chip_gen: v6e
topology: v6e:2x2x1
jax: 0.10.0
libtpu: 0.0.40
codegen_flags: <defaults>
</compile_context>

<pallas_src>
import functools

import jax
import jax.numpy as jnp
from jax import lax
from jax.experimental import pallas as pl
from jax.experimental.pallas import tpu as pltpu


# ---------------------------------------------------------------------------
# helpers
# ---------------------------------------------------------------------------
def _vmem_capacity_bytes():
    """Physical VMEM per core; fall back to the smallest generation (v7x, 64 MiB)."""
    try:
        return int(pltpu.get_tpu_info().vmem_capacity_bytes)
    except Exception:
        return 64 * 1024 * 1024


def _vmem_limit(est_bytes):
    """Scoped-VMEM request: estimate + headroom, capped at ~85% of physical VMEM."""
    cap = int(_vmem_capacity_bytes() * 0.85)
    return int(min(max(int(est_bytes * 1.25), 32 * 1024 * 1024), cap))


def _choose_tile(n, cap):
    """Largest tile <= cap that divides n and is a multiple of 8 (else full n)."""
    if n <= cap:
        return n
    t = (cap // 8) * 8
    while t >= 8:
        if n % t == 0:
            return t
        t -= 8
    return n


def _resident_spec(block_shape, index_map, nbytes):
    """BlockSpec for a block whose index_map is constant across the grid.

    Large resident blocks are single-buffered (double-buffering a never-changing
    block only wastes VMEM); tiny blocks keep the default pipeline mode.
    """
    if nbytes >= (1 << 20):
        return pl.BlockSpec(block_shape, index_map, pipeline_mode=pl.Buffered(1))
    return pl.BlockSpec(block_shape, index_map)


# ---------------------------------------------------------------------------
# Kernel 1: qkv projection, written directly in per-head (B*nh, S, hd) layout.
#   Q columns of the weight are pre-scaled by 1/sqrt(head_dim) (weight prep).
# ---------------------------------------------------------------------------
def _qkv_split_kernel(x_ref, w_ref, b_ref, q_ref, k_ref, v_ref, *, num_heads, head_dim):
    dim = num_heads * head_dim
    x = x_ref[0]                                                        # (ts, dim)
    qkv = jnp.dot(x, w_ref[...], preferred_element_type=jnp.float32)   # MXU, f32 acc
    # Cast right after the bias add: bounds the live f32 to this single block.
    qkv = (qkv + b_ref[...].astype(jnp.float32)).astype(q_ref.dtype)   # (ts, 3*dim)
    for h in range(num_heads):                                          # per-head stores
        q_ref[h] = qkv[:, h * head_dim:(h + 1) * head_dim]
        k_ref[h] = qkv[:, dim + h * head_dim:dim + (h + 1) * head_dim]
        v_ref[h] = qkv[:, 2 * dim + h * head_dim:2 * dim + (h + 1) * head_dim]


def qkv_project(x_bsd, qkv_w, qkv_b2, num_heads, *, ts_cap=512):
    """x_bsd: (B, S, dim) -> (q, k, v), each (B*num_heads, S, head_dim)."""
    B, S, dim = x_bsd.shape
    hd = dim // num_heads
    ts = _choose_tile(S, ts_cap)
    grid = (B, S // ts)
    itm = jnp.dtype(x_bsd.dtype).itemsize
    w_bytes = dim * 3 * dim * itm
    b_bytes = 3 * dim * itm
    est = (2 * ts * dim * itm            # x block (double-buffered)
           + w_bytes + b_bytes           # resident weight / bias
           + ts * 3 * dim * (4 + itm)    # f32 qkv + low-precision copy
           + 3 * 2 * ts * dim * itm)     # q/k/v output blocks (double-buffered)
    kernel = functools.partial(_qkv_split_kernel, num_heads=num_heads, head_dim=hd)
    out_sds = jax.ShapeDtypeStruct((B * num_heads, S, hd), x_bsd.dtype)
    return pl.pallas_call(
        kernel,
        out_shape=(out_sds, out_sds, out_sds),
        grid=grid,
        in_specs=[
            pl.BlockSpec((1, ts, dim), lambda b, s: (b, s, 0)),
            _resident_spec((dim, 3 * dim), lambda b, s: (0, 0), w_bytes),
            _resident_spec((1, 3 * dim), lambda b, s: (0, 0), b_bytes),
        ],
        out_specs=(
            pl.BlockSpec((num_heads, ts, hd), lambda b, s: (b, s, 0)),
            pl.BlockSpec((num_heads, ts, hd), lambda b, s: (b, s, 0)),
            pl.BlockSpec((num_heads, ts, hd), lambda b, s: (b, s, 0)),
        ),
        compiler_params=pltpu.CompilerParams(
            dimension_semantics=("parallel", "parallel"),
            vmem_limit_bytes=_vmem_limit(est)),
    )(x_bsd, qkv_w, qkv_b2)


# ---------------------------------------------------------------------------
# Kernel 2: flash-style attention with online softmax.
#   grid = (B*num_heads, q_tiles, kv_tiles); kv is the reduction ("arbitrary") axis.
# ---------------------------------------------------------------------------
def _flash_attn_kernel(q_ref, k_ref, v_ref, o_ref, m_sc, l_sc, acc_sc):
    ki = pl.program_id(2)

    @pl.when(ki == 0)
    def _():
        m_sc[...] = jnp.full(m_sc.shape, -jnp.inf, dtype=m_sc.dtype)
        l_sc[...] = jnp.zeros(l_sc.shape, dtype=l_sc.dtype)
        acc_sc[...] = jnp.zeros(acc_sc.shape, dtype=acc_sc.dtype)

    q = q_ref[0]                                   # (tq, hd), Q pre-scaled
    k = k_ref[0]                                   # (tkv, hd)
    v = v_ref[0]                                   # (tkv, hd)

    # q @ k^T contracting the head dims directly (no XLU transpose).
    s = lax.dot_general(q, k, (((1,), (1,)), ((), ())),
                        preferred_element_type=jnp.float32)        # (tq, tkv) f32

    m_prev = m_sc[...]
    m_new = jnp.maximum(m_prev, jnp.max(s, axis=-1, keepdims=True))
    alpha = jnp.exp(m_prev - m_new)
    p = jnp.exp(s - m_new)
    l_sc[...] = alpha * l_sc[...] + jnp.sum(p, axis=-1, keepdims=True)
    acc_sc[...] = alpha * acc_sc[...] + jnp.dot(
        p.astype(v.dtype), v, preferred_element_type=jnp.float32)
    m_sc[...] = m_new

    @pl.when(ki == pl.num_programs(2) - 1)
    def _():
        inv_l = pl.reciprocal(l_sc[...], approx=True)              # EUP, off the VPU
        o_ref[0] = (acc_sc[...] * inv_l).astype(o_ref.dtype)


def flash_attention(q, k, v, *, tq_cap=256, tkv_cap=512):
    """q, k, v: (B*num_heads, S, head_dim), Q pre-scaled -> (B*num_heads, S, head_dim)."""
    BH, S, hd = q.shape
    tq = _choose_tile(S, tq_cap)
    tkv = _choose_tile(S, tkv_cap)
    grid = (BH, S // tq, S // tkv)
    itm = jnp.dtype(q.dtype).itemsize
    est = (2 * tq * hd * itm             # q block
           + 2 * 2 * tkv * hd * itm      # k, v blocks
           + 2 * tq * hd * itm           # o block
           + 2 * tq * tkv * 4            # f32 score + exp
           + (tq * hd + 2 * tq) * 4)     # f32 scratch (acc, m, l)
    return pl.pallas_call(
        _flash_attn_kernel,
        out_shape=jax.ShapeDtypeStruct((BH, S, hd), q.dtype),
        grid=grid,
        in_specs=[
            pl.BlockSpec((1, tq, hd), lambda b, qi, ki: (b, qi, 0)),
            pl.BlockSpec((1, tkv, hd), lambda b, qi, ki: (b, ki, 0)),
            pl.BlockSpec((1, tkv, hd), lambda b, qi, ki: (b, ki, 0)),
        ],
        out_specs=pl.BlockSpec((1, tq, hd), lambda b, qi, ki: (b, qi, 0)),
        scratch_shapes=[
            pltpu.VMEM((tq, 1), jnp.float32),    # running max
            pltpu.VMEM((tq, 1), jnp.float32),    # running denom
            pltpu.VMEM((tq, hd), jnp.float32),   # output accumulator
        ],
        compiler_params=pltpu.CompilerParams(
            dimension_semantics=("parallel", "parallel", "arbitrary"),
            vmem_limit_bytes=_vmem_limit(est)),
    )(q, k, v)


# ---------------------------------------------------------------------------
# Kernel 3: head merge + output projection.
#   concat_h(attn_h) @ W  ==  sum_h attn_h @ W[h*hd:(h+1)*hd, :]
# ---------------------------------------------------------------------------
def _proj_merge_kernel(a_ref, w_ref, b_ref, o_ref, *, num_heads):
    ts = a_ref.shape[1]
    dim = o_ref.shape[-1]
    acc = jnp.zeros((ts, dim), jnp.float32)
    for h in range(num_heads):
        acc = acc + jnp.dot(a_ref[h], w_ref[h], preferred_element_type=jnp.float32)
    o_ref[0] = (acc + b_ref[...].astype(jnp.float32)).astype(o_ref.dtype)


def proj_merge_heads(attn_bh, proj_w_h, proj_b2, batch, *, ts_cap=512):
    """attn_bh: (B*nh, S, hd), proj_w_h: (nh, hd, dim), proj_b2: (1, dim) -> (B, S, dim)."""
    BH, S, hd = attn_bh.shape
    num_heads = BH // batch
    dim = num_heads * hd
    ts = _choose_tile(S, ts_cap)
    grid = (batch, S // ts)
    itm = jnp.dtype(attn_bh.dtype).itemsize
    w_bytes = num_heads * hd * dim * itm
    b_bytes = dim * itm
    est = (2 * num_heads * ts * hd * itm   # attention block (all heads for these rows)
           + w_bytes + b_bytes             # resident weight / bias
           + 2 * ts * dim * itm            # output block
           + ts * dim * 4)                 # f32 accumulator
    kernel = functools.partial(_proj_merge_kernel, num_heads=num_heads)
    return pl.pallas_call(
        kernel,
        out_shape=jax.ShapeDtypeStruct((batch, S, dim), attn_bh.dtype),
        grid=grid,
        in_specs=[
            pl.BlockSpec((num_heads, ts, hd), lambda b, s: (b, s, 0)),
            _resident_spec((num_heads, hd, dim), lambda b, s: (0, 0, 0), w_bytes),
            _resident_spec((1, dim), lambda b, s: (0, 0), b_bytes),
        ],
        out_specs=pl.BlockSpec((1, ts, dim), lambda b, s: (b, s, 0)),
        compiler_params=pltpu.CompilerParams(
            dimension_semantics=("parallel", "parallel"),
            vmem_limit_bytes=_vmem_limit(est)),
    )(attn_bh, proj_w_h, proj_b2)


# ---------------------------------------------------------------------------
# One-time weight prep + full forward (mirrors Attention.forward)
# ---------------------------------------------------------------------------
def prepare_weights(qkv_w, qkv_b, proj_w, proj_b, num_heads):
    """One-time prep (hoisted out of the forward): fold 1/sqrt(head_dim) into the Q
    columns of the qkv weight/bias and reshape the projection weight per-head."""
    dim = proj_w.shape[0]
    hd = dim // num_heads
    scale = hd ** (-0.5)
    qkv_w_s = qkv_w.at[:, :dim].multiply(scale)
    qkv_b_s = qkv_b.at[:dim].multiply(scale)
    return (qkv_w_s,
            qkv_b_s.reshape(1, 3 * dim),
            proj_w.reshape(num_heads, hd, dim),
            proj_b.reshape(1, dim))


def attention_forward(x, qkv_w_s, qkv_b2, proj_w_h, proj_b2, num_heads):
    """x: (B, H, W, dim) -> (B, H, W, dim); weights come from prepare_weights()."""
    B, H, W, dim = x.shape
    S = H * W
    x_bsd = x.reshape(B, S, dim)
    q, k, v = qkv_project(x_bsd, qkv_w_s, qkv_b2, num_heads)   # (B*nh, S, hd) each
    attn = flash_attention(q, k, v)                            # (B*nh, S, hd)
    out = proj_merge_heads(attn, proj_w_h, proj_b2, B)         # (B, S, dim)
    return out.reshape(B, H, W, dim)


# ---------------------------------------------------------------------------
# Pure-JAX reference (correctness check)
# ---------------------------------------------------------------------------
def attention_ref(x, qkv_w, qkv_b, proj_w, proj_b, num_heads):
    B, H, W, dim = x.shape
    S = H * W
    hd = dim // num_heads
    scale = hd ** (-0.5)
    qkv = x.reshape(B * S, dim) @ qkv_w + qkv_b
    qkv = qkv.reshape(B, S, 3, num_heads, hd).transpose(2, 0, 3, 1, 4)
    qkv = qkv.reshape(3, B * num_heads, S, hd)
    q, k, v = qkv[0], qkv[1], qkv[2]
    attn = (q * scale) @ jnp.swapaxes(k, -2, -1)
    attn = jax.nn.softmax(attn, axis=-1)
    out = (attn @ v).reshape(B, num_heads, H, W, hd).transpose(0, 2, 3, 1, 4)
    out = out.reshape(B * S, dim) @ proj_w + proj_b
    return out.reshape(B, H, W, dim)


if __name__ == "__main__":
    # Small shapes consistent with the module: dim=32, num_heads=4 -> head_dim=8
    B, H, W, dim = 2, 8, 8, 32
    num_heads = 4

    key = jax.random.PRNGKey(0)
    kx, kw1, kb1, kw2, kb2 = jax.random.split(key, 5)

    x = jax.random.normal(kx, (B, H, W, dim), dtype=jnp.float32)
    # nn.Linear(dim, 3*dim) — stored here already transposed as (in, out)
    qkv_w = jax.random.normal(kw1, (dim, 3 * dim), dtype=jnp.float32) * 0.1
    qkv_b = jax.random.normal(kb1, (3 * dim,), dtype=jnp.float32) * 0.1
    # nn.Linear(dim, dim)
    proj_w = jax.random.normal(kw2, (dim, dim), dtype=jnp.float32) * 0.1
    proj_b = jax.random.normal(kb2, (dim,), dtype=jnp.float32) * 0.1

    # One-time weight prep (hoisted out of the forward pass).
    prepped = prepare_weights(qkv_w, qkv_b, proj_w, proj_b, num_heads)

    out = attention_forward(x, *prepped, num_heads)
    out = jax.block_until_ready(out)

    ref = attention_ref(x, qkv_w, qkv_b, proj_w, proj_b, num_heads)
    assert out.shape == (B, H, W, dim)
    # slightly looser tolerance: softmax denominator uses the EUP approx reciprocal
    assert jnp.allclose(out, ref, atol=2e-3, rtol=2e-3), "mismatch vs reference"

    print("KERNEL_OK")
</pallas_src>

<mosaic_0001>
module attributes {stable_mosaic.version = 11 : i64} {
  func.func @_qkv_split_kernel(%arg0: i32, %arg1: i32, %arg2: memref<1x64x32xf32, #tpu.memory_space<vmem>>, %arg3: memref<32x96xf32, #tpu.memory_space<vmem>>, %arg4: memref<1x96xf32, #tpu.memory_space<vmem>>, %arg5: memref<4x64x8xf32, #tpu.memory_space<vmem>>, %arg6: memref<4x64x8xf32, #tpu.memory_space<vmem>>, %arg7: memref<4x64x8xf32, #tpu.memory_space<vmem>>) attributes {dimension_semantics = [#tpu.dimension_semantics<parallel>, #tpu.dimension_semantics<parallel>], iteration_bounds = array<i64: 2, 1>, scalar_prefetch = 0 : i64, scratch_operands = 0 : i64, tpu.core_type = #tpu.core_type<tc>, window_params = [{transform_indices = @transform_0, window_bounds = array<i64: 1, 64, 32>}, {pipeline_mode = #tpu.pipeline_mode<synchronous>, transform_indices = @transform_1, window_bounds = array<i64: 32, 96>}, {pipeline_mode = #tpu.pipeline_mode<synchronous>, transform_indices = @transform_2, window_bounds = array<i64: 1, 96>}, {transform_indices = @transform_3, window_bounds = array<i64: 4, 64, 8>}, {transform_indices = @transform_4, window_bounds = array<i64: 4, 64, 8>}, {transform_indices = @transform_5, window_bounds = array<i64: 4, 64, 8>}]} {
    %c0 = arith.constant 0 : index
    %c0_0 = arith.constant 0 : index
    %c0_1 = arith.constant 0 : index
    %0 = vector.load %arg2[%c0, %c0_0, %c0_1] : memref<1x64x32xf32, #tpu.memory_space<vmem>>, vector<1x64x32xf32>
    %1 = vector.shape_cast %0 : vector<1x64x32xf32> to vector<64x32xf32>
    %c0_2 = arith.constant 0 : index
    %c0_3 = arith.constant 0 : index
    %2 = vector.load %arg3[%c0_2, %c0_3] : memref<32x96xf32, #tpu.memory_space<vmem>>, vector<32x96xf32>
    %cst = arith.constant dense<0.000000e+00> : vector<64x96xf32>
    %3 = tpu.matmul %1, %2, %cst {dimension_numbers = #tpu.dot_dimension_numbers<[1], [0], [0], [1], [0, 0, 1, 1], [], []>} : vector<64x32xf32>, vector<32x96xf32>, vector<64x96xf32> -> vector<64x96xf32>
    %c0_4 = arith.constant 0 : index
    %c0_5 = arith.constant 0 : index
    %4 = vector.load %arg4[%c0_4, %c0_5] : memref<1x96xf32, #tpu.memory_space<vmem>>, vector<1x96xf32>
    %5 = vector.broadcast %4 : vector<1x96xf32> to vector<64x96xf32>
    %6 = arith.addf %3, %5 : vector<64x96xf32>
    %7 = vector.extract_strided_slice %6 {offsets = [0, 0], sizes = [64, 8], strides = [1, 1]} : vector<64x96xf32> to vector<64x8xf32>
    %c0_6 = arith.constant 0 : index
    %c0_7 = arith.constant 0 : index
    %c0_8 = arith.constant 0 : index
    %8 = vector.load %arg5[%c0_6, %c0_7, %c0_8] : memref<4x64x8xf32, #tpu.memory_space<vmem>>, vector<1x64x8xf32>
    %9 = vector.shape_cast %8 : vector<1x64x8xf32> to vector<64x8xf32>
    %10 = vector.shape_cast %7 : vector<64x8xf32> to vector<1x64x8xf32>
    tpu.vector_store %arg5[%c0_6, %c0_7, %c0_8], %10 {strides = array<i32>} : memref<4x64x8xf32, #tpu.memory_space<vmem>>, vector<1x64x8xf32>,
    %11 = vector.extract_strided_slice %6 {offsets = [0, 32], sizes = [64, 8], strides = [1, 1]} : vector<64x96xf32> to vector<64x8xf32>
    %c0_9 = arith.constant 0 : index
    %c0_10 = arith.constant 0 : index
    %c0_11 = arith.constant 0 : index
    %12 = vector.load %arg6[%c0_9, %c0_10, %c0_11] : memref<4x64x8xf32, #tpu.memory_space<vmem>>, vector<1x64x8xf32>
    %13 = vector.shape_cast %12 : vector<1x64x8xf32> to vector<64x8xf32>
    %14 = vector.shape_cast %11 : vector<64x8xf32> to vector<1x64x8xf32>
    tpu.vector_store %arg6[%c0_9, %c0_10, %c0_11], %14 {strides = array<i32>} : memref<4x64x8xf32, #tpu.memory_space<vmem>>, vector<1x64x8xf32>,
    %15 = vector.extract_strided_slice %6 {offsets = [0, 64], sizes = [64, 8], strides = [1, 1]} : vector<64x96xf32> to vector<64x8xf32>
    %c0_12 = arith.constant 0 : index
    %c0_13 = arith.constant 0 : index
    %c0_14 = arith.constant 0 : index
    %16 = vector.load %arg7[%c0_12, %c0_13, %c0_14] : memref<4x64x8xf32, #tpu.memory_space<vmem>>, vector<1x64x8xf32>
    %17 = vector.shape_cast %16 : vector<1x64x8xf32> to vector<64x8xf32>
    %18 = vector.shape_cast %15 : vector<64x8xf32> to vector<1x64x8xf32>
    tpu.vector_store %arg7[%c0_12, %c0_13, %c0_14], %18 {strides = array<i32>} : memref<4x64x8xf32, #tpu.memory_space<vmem>>, vector<1x64x8xf32>,
    %19 = vector.extract_strided_slice %6 {offsets = [0, 8], sizes = [64, 8], strides = [1, 1]} : vector<64x96xf32> to vector<64x8xf32>
    %c1 = arith.constant 1 : index
    %c0_15 = arith.constant 0 : index
    %c0_16 = arith.constant 0 : index
    %20 = vector.load %arg5[%c1, %c0_15, %c0_16] : memref<4x64x8xf32, #tpu.memory_space<vmem>>, vector<1x64x8xf32>
    %21 = vector.shape_cast %20 : vector<1x64x8xf32> to vector<64x8xf32>
    %22 = vector.shape_cast %19 : vector<64x8xf32> to vector<1x64x8xf32>
    tpu.vector_store %arg5[%c1, %c0_15, %c0_16], %22 {strides = array<i32>} : memref<4x64x8xf32, #tpu.memory_space<vmem>>, vector<1x64x8xf32>,
    %23 = vector.extract_strided_slice %6 {offsets = [0, 40], sizes = [64, 8], strides = [1, 1]} : vector<64x96xf32> to vector<64x8xf32>
    %c1_17 = arith.constant 1 : index
    %c0_18 = arith.constant 0 : index
    %c0_19 = arith.constant 0 : index
    %24 = vector.load %arg6[%c1_17, %c0_18, %c0_19] : memref<4x64x8xf32, #tpu.memory_space<vmem>>, vector<1x64x8xf32>
    %25 = vector.shape_cast %24 : vector<1x64x8xf32> to vector<64x8xf32>
    %26 = vector.shape_cast %23 : vector<64x8xf32> to vector<1x64x8xf32>
    tpu.vector_store %arg6[%c1_17, %c0_18, %c0_19], %26 {strides = array<i32>} : memref<4x64x8xf32, #tpu.memory_space<vmem>>, vector<1x64x8xf32>,
    %27 = vector.extract_strided_slice %6 {offsets = [0, 72], sizes = [64, 8], strides = [1, 1]} : vector<64x96xf32> to vector<64x8xf32>
    %c1_20 = arith.constant 1 : index
    %c0_21 = arith.constant 0 : index
    %c0_22 = arith.constant 0 : index
    %28 = vector.load %arg7[%c1_20, %c0_21, %c0_22] : memref<4x64x8xf32, #tpu.memory_space<vmem>>, vector<1x64x8xf32>
    %29 = vector.shape_cast %28 : vector<1x64x8xf32> to vector<64x8xf32>
    %30 = vector.shape_cast %27 : vector<64x8xf32> to vector<1x64x8xf32>
    tpu.vector_store %arg7[%c1_20, %c0_21, %c0_22], %30 {strides = array<i32>} : memref<4x64x8xf32, #tpu.memory_space<vmem>>, vector<1x64x8xf32>,
    %31 = vector.extract_strided_slice %6 {offsets = [0, 16], sizes = [64, 8], strides = [1, 1]} : vector<64x96xf32> to vector<64x8xf32>
    %c2 = arith.constant 2 : index
    %c0_23 = arith.constant 0 : index
    %c0_24 = arith.constant 0 : index
    %32 = vector.load %arg5[%c2, %c0_23, %c0_24] : memref<4x64x8xf32, #tpu.memory_space<vmem>>, vector<1x64x8xf32>
    %33 = vector.shape_cast %32 : vector<1x64x8xf32> to vector<64x8xf32>
    %34 = vector.shape_cast %31 : vector<64x8xf32> to vector<1x64x8xf32>
    tpu.vector_store %arg5[%c2, %c0_23, %c0_24], %34 {strides = array<i32>} : memref<4x64x8xf32, #tpu.memory_space<vmem>>, vector<1x64x8xf32>,
    %35 = vector.extract_strided_slice %6 {offsets = [0, 48], sizes = [64, 8], strides = [1, 1]} : vector<64x96xf32> to vector<64x8xf32>
    %c2_25 = arith.constant 2 : index
    %c0_26 = arith.constant 0 : index
    %c0_27 = arith.constant 0 : index
    %36 = vector.load %arg6[%c2_25, %c0_26, %c0_27] : memref<4x64x8xf32, #tpu.memory_space<vmem>>, vector<1x64x8xf32>
    %37 = vector.shape_cast %36 : vector<1x64x8xf32> to vector<64x8xf32>
    %38 = vector.shape_cast %35 : vector<64x8xf32> to vector<1x64x8xf32>
    tpu.vector_store %arg6[%c2_25, %c0_26, %c0_27], %38 {strides = array<i32>} : memref<4x64x8xf32, #tpu.memory_space<vmem>>, vector<1x64x8xf32>,
    %39 = vector.extract_strided_slice %6 {offsets = [0, 80], sizes = [64, 8], strides = [1, 1]} : vector<64x96xf32> to vector<64x8xf32>
    %c2_28 = arith.constant 2 : index
    %c0_29 = arith.constant 0 : index
    %c0_30 = arith.constant 0 : index
    %40 = vector.load %arg7[%c2_28, %c0_29, %c0_30] : memref<4x64x8xf32, #tpu.memory_space<vmem>>, vector<1x64x8xf32>
    %41 = vector.shape_cast %40 : vector<1x64x8xf32> to vector<64x8xf32>
    %42 = vector.shape_cast %39 : vector<64x8xf32> to vector<1x64x8xf32>
    tpu.vector_store %arg7[%c2_28, %c0_29, %c0_30], %42 {strides = array<i32>} : memref<4x64x8xf32, #tpu.memory_space<vmem>>, vector<1x64x8xf32>,
    %43 = vector.extract_strided_slice %6 {offsets = [0, 24], sizes = [64, 8], strides = [1, 1]} : vector<64x96xf32> to vector<64x8xf32>
    %c3 = arith.constant 3 : index
    %c0_31 = arith.constant 0 : index
    %c0_32 = arith.constant 0 : index
    %44 = vector.load %arg5[%c3, %c0_31, %c0_32] : memref<4x64x8xf32, #tpu.memory_space<vmem>>, vector<1x64x8xf32>
    %45 = vector.shape_cast %44 : vector<1x64x8xf32> to vector<64x8xf32>
    %46 = vector.shape_cast %43 : vector<64x8xf32> to vector<1x64x8xf32>
    tpu.vector_store %arg5[%c3, %c0_31, %c0_32], %46 {strides = array<i32>} : memref<4x64x8xf32, #tpu.memory_space<vmem>>, vector<1x64x8xf32>,
    %47 = vector.extract_strided_slice %6 {offsets = [0, 56], sizes = [64, 8], strides = [1, 1]} : vector<64x96xf32> to vector<64x8xf32>
    %c3_33 = arith.constant 3 : index
    %c0_34 = arith.constant 0 : index
    %c0_35 = arith.constant 0 : index
    %48 = vector.load %arg6[%c3_33, %c0_34, %c0_35] : memref<4x64x8xf32, #tpu.memory_space<vmem>>, vector<1x64x8xf32>
    %49 = vector.shape_cast %48 : vector<1x64x8xf32> to vector<64x8xf32>
    %50 = vector.shape_cast %47 : vector<64x8xf32> to vector<1x64x8xf32>
    tpu.vector_store %arg6[%c3_33, %c0_34, %c0_35], %50 {strides = array<i32>} : memref<4x64x8xf32, #tpu.memory_space<vmem>>, vector<1x64x8xf32>,
    %51 = vector.extract_strided_slice %6 {offsets = [0, 88], sizes = [64, 8], strides = [1, 1]} : vector<64x96xf32> to vector<64x8xf32>
    %c3_36 = arith.constant 3 : index
    %c0_37 = arith.constant 0 : index
    %c0_38 = arith.constant 0 : index
    %52 = vector.load %arg7[%c3_36, %c0_37, %c0_38] : memref<4x64x8xf32, #tpu.memory_space<vmem>>, vector<1x64x8xf32>
    %53 = vector.shape_cast %52 : vector<1x64x8xf32> to vector<64x8xf32>
    %54 = vector.shape_cast %51 : vector<64x8xf32> to vector<1x64x8xf32>
    tpu.vector_store %arg7[%c3_36, %c0_37, %c0_38], %54 {strides = array<i32>} : memref<4x64x8xf32, #tpu.memory_space<vmem>>, vector<1x64x8xf32>,
    return
  }
  func.func @transform_0(%arg0: i32, %arg1: i32) -> (i32, i32, i32) {
    %c0_i32 = arith.constant 0 : i32
    %c0_i32_0 = arith.constant 0 : i32
    return %arg0, %arg1, %c0_i32 : i32, i32, i32
  }
  func.func @transform_1(%arg0: i32, %arg1: i32) -> (i32, i32) {
    %c0_i32 = arith.constant 0 : i32
    %c0_i32_0 = arith.constant 0 : i32
    %c0_i32_1 = arith.constant 0 : i32
    return %c0_i32, %c0_i32_0 : i32, i32
  }
  func.func @transform_2(%arg0: i32, %arg1: i32) -> (i32, i32) {
    %c0_i32 = arith.constant 0 : i32
    %c0_i32_0 = arith.constant 0 : i32
    %c0_i32_1 = arith.constant 0 : i32
    return %c0_i32, %c0_i32_0 : i32, i32
  }
  func.func @transform_3(%arg0: i32, %arg1: i32) -> (i32, i32, i32) {
    %c0_i32 = arith.constant 0 : i32
    %c0_i32_0 = arith.constant 0 : i32
    return %arg0, %arg1, %c0_i32 : i32, i32, i32
  }
  func.func @transform_4(%arg0: i32, %arg1: i32) -> (i32, i32, i32) {
    %c0_i32 = arith.constant 0 : i32
    %c0_i32_0 = arith.constant 0 : i32
    return %arg0, %arg1, %c0_i32 : i32, i32, i32
  }
  func.func @transform_5(%arg0: i32, %arg1: i32) -> (i32, i32, i32) {
    %c0_i32 = arith.constant 0 : i32
    %c0_i32_0 = arith.constant 0 : i32
    return %arg0, %arg1, %c0_i32 : i32, i32, i32
  }
}

</mosaic_0001>

<llo_original>
// kernel: tpu_custom_call.1
$region0: #{tpu_custom_call.1}
  #allocation0 [shape = 'u32[]', space=smem, size = 0x4, offset = 0x4, fixed_abs, tag = 'smem constant byte address 0x4 - core index']
  #allocation1 [shape = 'u32[144,128]{1,0:T(1,128)}', space=vmem, size = 0x12000, scoped, tag = 'internal scratch']
  %s0 = inlined_call_operand.vmem [shape: f32[2,64,32], index: 0, kind: input, shape index: {}]
  %s1 = inlined_call_operand.vmem [shape: f32[32,96], index: 1, kind: input, shape index: {}]
  %s2 = inlined_call_operand.vmem [shape: f32[1,96], index: 2, kind: input, shape index: {}]
  %s3 = inlined_call_operand.vmem [shape: f32[8,64,8], index: 3, kind: output, shape index: {0}]
  %s4 = inlined_call_operand.vmem [shape: f32[8,64,8], index: 4, kind: output, shape index: {1}]
  %s5 = inlined_call_operand.vmem [shape: f32[8,64,8], index: 5, kind: output, shape index: {2}]
  %6 = xla_tuple %s3, %s4, %s5
  %s7 = sld [smem:[#allocation0]]
  $region61: #{tpu_custom_call.1} parent=0
    _
  %s9 = ssub.s32 1, %s7
  %s10 = scalar_select 0, %s9, %s7
  loop: start=0, step=1, limit=4
  $region2: #{tpu_custom_call.1} parent=0 // loop_pre_header
    _
  $region3: #{tpu_custom_call.1} parent=0 // loop_header
    %s12 = sphi 0, %s16
    %p13 = scmp.ge.s32.totalorder %s12, 4
    %s19 = sphi 0, %s31
    %s20 = sphi 0, %s27
    %s21 = sphi 0, %s19
    %s22 = sphi 0, %s20
    %s23 = sphi 0, %s21
    %s24 = sphi 0, %s22
    %s36 = sphi 0, %s38
    %s39 = sphi 0, %s36
    %s40 = sphi 0, %s39
    %s56 = sphi 0, %s40
    %s60 = sphi 0, %s60
    %s62 = sphi 0, %s60
    %s63 = sphi 0, %s62
    %s77 = sphi 0, %s63
    %s81 = sphi 0, %s81
    %s83 = sphi 0, %s81
    %s84 = sphi 0, %s83
    %s98 = sphi 0, %s84
    %s106 = sphi 0, %s108
    %s109 = sphi 0, %s106
    %s110 = sphi 0, %s109
    %s126 = sphi 0, %s110
    %s134 = sphi 0, %s136
    %s137 = sphi 0, %s134
    %s138 = sphi 0, %s137
    %s154 = sphi 0, %s138
    %s162 = sphi 0, %s164
    %s165 = sphi 0, %s162
    %s166 = sphi 0, %s165
    %s182 = sphi 0, %s166
  $region4: #{tpu_custom_call.1} parent=0 // loop_header_branch
    %15 = sbr.rel (%p13) target = $region8
  $region5: #{tpu_custom_call.1} parent=0 // loop_body
    %s17 = ssub.s32 %s12, 1
    %s18 = ssub.s32 %s12, 2
    %s25 = sadd.s32 1, %s20
    %p26 = scmp.ge.s32.totalorder %s25, 1
    %s27 = scalar_select %p26, 0, %s25
    %s28 = sadd.s32 1, %s19
    %s29 = scalar_select %p26, %s28, %s19
    %p30 = scmp.ge.s32.totalorder %s29, 2
    %s31 = scalar_select %p30, 0, %s29
    %s32 = ssub.s32 %s19, %s31
    %s33 = ssub.s32 %s20, %s27
    %s34 = sor.u32 %s32, %s33
    %p35 = scmp.eq.s32.totalorder %s34, 0
    %s37 = sadd.s32 %s36, 1
    %s38 = scalar_select %p35, %s36, %s37
    %p41 = pneg %p35
    %p42 = scmp.eq.s32.totalorder %s12, 1
    %p43 = por %p41, %p42
    %p44 = scmp.ne.s32.totalorder %s36, %s39
    %p45 = scmp.eq.s32.totalorder %s12, 0
    %p46 = por %p44, %p45
    %p47 = scmp.ne.s32.totalorder %s36, %s39
    %p48 = scmp.eq.s32.totalorder %s17, 1
    %p49 = por %p47, %p48
    %p50 = scmp.ne.s32.totalorder %s39, %s40
    %p51 = scmp.eq.s32.totalorder %s17, 0
    %p52 = por %p50, %p51
    %p53 = scmp.ne.s32.totalorder %s39, %s40
    %p54 = scmp.eq.s32.totalorder %s18, 1
    %p55 = por %p53, %p54
    %p57 = scmp.ne.s32.totalorder %s40, %s56
    %p58 = scmp.eq.s32.totalorder %s18, 0
    %p59 = por %p57, %p58
    %s61 = sadd.s32 %s60, 1
    %p64 = scmp.eq.s32.totalorder %s12, 1
    %p65 = scmp.ne.s32.totalorder %s60, %s62
    %p66 = scmp.eq.s32.totalorder %s12, 0
    %p67 = por %p65, %p66
    %p68 = scmp.ne.s32.totalorder %s60, %s62
    %p69 = scmp.eq.s32.totalorder %s17, 1
    %p70 = por %p68, %p69
    %p71 = scmp.ne.s32.totalorder %s62, %s63
    %p72 = scmp.eq.s32.totalorder %s17, 0
    %p73 = por %p71, %p72
    %p74 = scmp.ne.s32.totalorder %s62, %s63
    %p75 = scmp.eq.s32.totalorder %s18, 1
    %p76 = por %p74, %p75
    %p78 = scmp.ne.s32.totalorder %s63, %s77
    %p79 = scmp.eq.s32.totalorder %s18, 0
    %p80 = por %p78, %p79
    %s82 = sadd.s32 %s81, 1
    %p85 = scmp.eq.s32.totalorder %s12, 1
    %p86 = scmp.ne.s32.totalorder %s81, %s83
    %p87 = scmp.eq.s32.totalorder %s12, 0
    %p88 = por %p86, %p87
    %p89 = scmp.ne.s32.totalorder %s81, %s83
    %p90 = scmp.eq.s32.totalorder %s17, 1
    %p91 = por %p89, %p90
    %p92 = scmp.ne.s32.totalorder %s83, %s84
    %p93 = scmp.eq.s32.totalorder %s17, 0
    %p94 = por %p92, %p93
    %p95 = scmp.ne.s32.totalorder %s83, %s84
    %p96 = scmp.eq.s32.totalorder %s18, 1
    %p97 = por %p95, %p96
    %p99 = scmp.ne.s32.totalorder %s84, %s98
    %p100 = scmp.eq.s32.totalorder %s18, 0
    %p101 = por %p99, %p100
    %s102 = ssub.s32 %s19, %s31
    %s103 = ssub.s32 %s20, %s27
    %s104 = sor.u32 %s102, %s103
    %p105 = scmp.eq.s32.totalorder %s104, 0
    %s107 = sadd.s32 %s106, 1
    %s108 = scalar_select %p105, %s106, %s107
    %p111 = pneg %p105
    %p112 = scmp.eq.s32.totalorder %s12, 1
    %p113 = por %p111, %p112
    %p114 = scmp.ne.s32.totalorder %s106, %s109
    %p115 = scmp.eq.s32.totalorder %s12, 0
    %p116 = por %p114, %p115
    %p117 = scmp.ne.s32.totalorder %s106, %s109
    %p118 = scmp.eq.s32.totalorder %s17, 1
    %p119 = por %p117, %p118
    %p120 = scmp.ne.s32.totalorder %s109, %s110
    %p121 = scmp.eq.s32.totalorder %s17, 0
    %p122 = por %p120, %p121
    %p123 = scmp.ne.s32.totalorder %s109, %s110
    %p124 = scmp.eq.s32.totalorder %s18, 1
    %p125 = por %p123, %p124
    %p127 = scmp.ne.s32.totalorder %s110, %s126
    %p128 = scmp.eq.s32.totalorder %s18, 0
    %p129 = por %p127, %p128
    %s130 = ssub.s32 %s19, %s31
    %s131 = ssub.s32 %s20, %s27
    %s132 = sor.u32 %s130, %s131
    %p133 = scmp.eq.s32.totalorder %s132, 0
    %s135 = sadd.s32 %s134, 1
    %s136 = scalar_select %p133, %s134, %s135
    %p139 = pneg %p133
    %p140 = scmp.eq.s32.totalorder %s12, 1
    %p141 = por %p139, %p140
    %p142 = scmp.ne.s32.totalorder %s134, %s137
    %p143 = scmp.eq.s32.totalorder %s12, 0
    %p144 = por %p142, %p143
    %p145 = scmp.ne.s32.totalorder %s134, %s137
    %p146 = scmp.eq.s32.totalorder %s17, 1
    %p147 = por %p145, %p146
    %p148 = scmp.ne.s32.totalorder %s137, %s138
    %p149 = scmp.eq.s32.totalorder %s17, 0
    %p150 = por %p148, %p149
    %p151 = scmp.ne.s32.totalorder %s137, %s138
    %p152 = scmp.eq.s32.totalorder %s18, 1
    %p153 = por %p151, %p152
    %p155 = scmp.ne.s32.totalorder %s138, %s154
    %p156 = scmp.eq.s32.totalorder %s18, 0
    %p157 = por %p155, %p156
    %s158 = ssub.s32 %s19, %s31
    %s159 = ssub.s32 %s20, %s27
    %s160 = sor.u32 %s158, %s159
    %p161 = scmp.eq.s32.totalorder %s160, 0
    %s163 = sadd.s32 %s162, 1
    %s164 = scalar_select %p161, %s162, %s163
    %p167 = pneg %p161
    %p168 = scmp.eq.s32.totalorder %s12, 1
    %p169 = por %p167, %p168
    %p170 = scmp.ne.s32.totalorder %s162, %s165
    %p171 = scmp.eq.s32.totalorder %s12, 0
    %p172 = por %p170, %p171
    %p173 = scmp.ne.s32.totalorder %s162, %s165
    %p174 = scmp.eq.s32.totalorder %s17, 1
    %p175 = por %p173, %p174
    %p176 = scmp.ne.s32.totalorder %s165, %s166
    %p177 = scmp.eq.s32.totalorder %s17, 0
    %p178 = por %p176, %p177
    %p179 = scmp.ne.s32.totalorder %s165, %s166
    %p180 = scmp.eq.s32.totalorder %s18, 1
    %p181 = por %p179, %p180
    %p183 = scmp.ne.s32.totalorder %s166, %s182
    %p184 = scmp.eq.s32.totalorder %s18, 0
    %p185 = por %p183, %p184
    %p186 = scmp.le.s32.totalorder 1, %s12
    %p187 = scmp.lt.s32.totalorder %s12, 3
    %p188 = pnand %p186, %p187
    %p189 = pneg %p188
    // Predicated region
    $region9: #{tpu_custom_call.1} parent=5 // pred_check
      _
    $region10: #{tpu_custom_call.1} parent=5 // pred_check_branch
      %191 = sbr.rel (%p188) target = $region12
    $region11: #{tpu_custom_call.1} parent=5 // pred_region
      %s192 = ssub.s32 %s12, 1
      // Predicated region
      $region13: #{tpu_custom_call.1} parent=11 // pred_check
        %p193 = pneg %p73
      $region14: #{tpu_custom_call.1} parent=11 // pred_check_branch
        %195 = sbr.rel (%p193) target = $region16
      $region15: #{tpu_custom_call.1} parent=11 // pred_region
        _
      $region16: #{tpu_custom_call.1} parent=11 // pred_fallthru
        _
      // Predicated region
      $region17: #{tpu_custom_call.1} parent=11 // pred_check
        %p196 = pneg %p94
      $region18: #{tpu_custom_call.1} parent=11 // pred_check_branch
        %198 = sbr.rel (%p196) target = $region20
      $region19: #{tpu_custom_call.1} parent=11 // pred_region
        _
      $region20: #{tpu_custom_call.1} parent=11 // pred_fallthru
        _
    $region12: #{tpu_custom_call.1} parent=5 // pred_fallthru
      _
    %p199 = scmp.lt.s32.totalorder %s12, 2
    // Predicated region
    $region21: #{tpu_custom_call.1} parent=5 // pred_check
      %p200 = pneg %p199
    $region22: #{tpu_custom_call.1} parent=5 // pred_check_branch
      %202 = sbr.rel (%p200) target = $region24
    $region23: #{tpu_custom_call.1} parent=5 // pred_region
      // Predicated region
      $region25: #{tpu_custom_call.1} parent=23 // pred_check
        %p203 = pneg %p46
      $region26: #{tpu_custom_call.1} parent=23 // pred_check_branch
        %205 = sbr.rel (%p203) target = $region28
      $region27: #{tpu_custom_call.1} parent=23 // pred_region
        %s206 = smul.u32 8, %s20
        %p207 = scmp.lt.s32.totalorder %s19, 1
        %s208 = scalar_select %p207, %s19, 1
        %p209 = scmp.lt.s32.totalorder %s206, 7
        %s210 = scalar_select %p209, %s206, 7
        %s211 = smul.addr %s208, 8
        %s212 = sadd.s32 %s210, %s211
        %s213 = smul.addr %s212, 8
        %s214 = scalar_lea.vmem %s0, %s213
        %s215 = smul.u32 8, %s20
      $region28: #{tpu_custom_call.1} parent=23 // pred_fallthru
        _
    $region24: #{tpu_custom_call.1} parent=5 // pred_fallthru
      _
    %p216 = scmp.le.s32.totalorder 1, %s12
    %p217 = scmp.lt.s32.totalorder %s12, 3
    %p218 = pnand %p216, %p217
    %p219 = pneg %p218
    // Predicated region
    $region29: #{tpu_custom_call.1} parent=5 // pred_check
      _
    $region30: #{tpu_custom_call.1} parent=5 // pred_check_branch
      %221 = sbr.rel (%p218) target = $region32
    $region31: #{tpu_custom_call.1} parent=5 // pred_region
      %s222 = ssub.s32 %s12, 1
      %s223 = smul.u32 8, %s22
      %p224 = scmp.lt.s32.totalorder %s21, 1
      %s225 = scalar_select %p224, %s21, 1
      %p226 = scmp.lt.s32.totalorder %s223, 7
      %s227 = scalar_select %p226, %s223, 7
      %s228 = smul.addr %s225, 8
      %s229 = sadd.s32 %s227, %s228
      %s230 = smul.addr %s229, 8
      %s231 = scalar_lea.vmem %s0, %s230
      %p232 = pneg %p52
      %p233 = pneg %p49
      %p234 = pneg %p73
      %p235 = pneg %p70
      %p236 = pneg %p94
      %p237 = pneg %p91
      %p238 = pneg %p122
      %p239 = pneg %p119
      %s240 = smul.u32 4, %s21
      %s241 = smul.u32 8, %s22
      %p242 = scmp.lt.s32.totalorder %s240, 7
      %s243 = scalar_select %p242, %s240, 7
      %p244 = scmp.lt.s32.totalorder %s241, 7
      %s245 = scalar_select %p244, %s241, 7
      %s246 = smul.addr %s243, 8
      %s247 = sadd.s32 %s245, %s246
      %s248 = smul.addr %s247, 8
      %s249 = scalar_lea.vmem %s3, %s248
      %p250 = pneg %p150
      %p251 = pneg %p147
      %s252 = smul.u32 4, %s21
      %s253 = smul.u32 8, %s22
      %p254 = scmp.lt.s32.totalorder %s252, 7
      %s255 = scalar_select %p254, %s252, 7
      %p256 = scmp.lt.s32.totalorder %s253, 7
      %s257 = scalar_select %p256, %s253, 7
      %s258 = smul.addr %s255, 8
      %s259 = sadd.s32 %s257, %s258
      %s260 = smul.addr %s259, 8
      %s261 = scalar_lea.vmem %s4, %s260
      %p262 = pneg %p178
      %p263 = pneg %p175
      %s264 = smul.u32 4, %s21
      %s265 = smul.u32 8, %s22
      %p266 = scmp.lt.s32.totalorder %s264, 7
      %s267 = scalar_select %p266, %s264, 7
      %p268 = scmp.lt.s32.totalorder %s265, 7
      %s269 = scalar_select %p268, %s265, 7
      %s270 = smul.addr %s267, 8
      %s271 = sadd.s32 %s269, %s270
      %s272 = smul.addr %s271, 8
      %s273 = scalar_lea.vmem %s5, %s272
      %s274 = smul.u32 8, %s22
      %p275 = scmp.lt.s32.totalorder %s21, 1
      %s276 = scalar_select %p275, %s21, 1
      %p277 = scmp.lt.s32.totalorder %s274, 7
      %s278 = scalar_select %p277, %s274, 7
      %s279 = smul.addr %s276, 8
      %s280 = sadd.s32 %s278, %s279
      %s281 = smul.addr %s280, 8
      %s282 = scalar_lea.vmem %s0, %s281
      %s283 = smul.u32 8, %s22
      %s284 = smul.u32 4, %s21
      %s285 = smul.u32 8, %s22
      %p286 = scmp.lt.s32.totalorder %s284, 7
      %s287 = scalar_select %p286, %s284, 7
      %p288 = scmp.lt.s32.totalorder %s285, 7
      %s289 = scalar_select %p288, %s285, 7
      %s290 = smul.addr %s287, 8
      %s291 = sadd.s32 %s289, %s290
      %s292 = smul.addr %s291, 8
      %s293 = scalar_lea.vmem %s3, %s292
      %s294 = smul.u32 4, %s21
      %s295 = smul.u32 8, %s22
      %s296 = smul.u32 4, %s21
      %s297 = smul.u32 8, %s22
      %p298 = scmp.lt.s32.totalorder %s296, 7
      %s299 = scalar_select %p298, %s296, 7
      %p300 = scmp.lt.s32.totalorder %s297, 7
      %s301 = scalar_select %p300, %s297, 7
      %s302 = smul.addr %s299, 8
      %s303 = sadd.s32 %s301, %s302
      %s304 = smul.addr %s303, 8
      %s305 = scalar_lea.vmem %s4, %s304
      %s306 = smul.u32 4, %s21
      %s307 = smul.u32 8, %s22
      %s308 = smul.u32 4, %s21
      %s309 = smul.u32 8, %s22
      %p310 = scmp.lt.s32.totalorder %s308, 7
      %s311 = scalar_select %p310, %s308, 7
      %p312 = scmp.lt.s32.totalorder %s309, 7
      %s313 = scalar_select %p312, %s309, 7
      %s314 = smul.addr %s311, 8
      %s315 = sadd.s32 %s313, %s314
      %s316 = smul.addr %s315, 8
      %s317 = scalar_lea.vmem %s5, %s316
      %s318 = smul.u32 4, %s21
      %s319 = smul.u32 8, %s22
      %v320 = vld [vmem:[%s282] sm:$0xff]
      %v321 = vld [vmem:[%s282 + $0x8] sm:$0xff]
      %v322 = vld [vmem:[%s282 + $0x10] sm:$0xff]
      %v323 = vld [vmem:[%s282 + $0x18] sm:$0xff]
      %v324 = vld [vmem:[%s282 + $0x20] sm:$0xff]
      %v325 = vld [vmem:[%s282 + $0x28] sm:$0xff]
      %v326 = vld [vmem:[%s282 + $0x30] sm:$0xff]
      %v327 = vld [vmem:[%s282 + $0x38] sm:$0xff]
      %v328 = vld [vmem:[%s1] sm:$0xff]
      %v329 = vld [vmem:[%s1 + $0x8] sm:$0xff]
      %v330 = vld [vmem:[%s1 + $0x10] sm:$0xff]
      %v331 = vld [vmem:[%s1 + $0x18] sm:$0xff]
      %v332 = vld [vmem:[%s2] sm:$0x1]
      %v334 = vlaneseq
      %v335 = vshrl.u32 %v334, 7
      %v336 = vsub.s32 0, %v335
      %v337 = vrot.slane %v332, %v336
      %vm339 = vcmask 261120
      %v341 = vsel %vm339, %v320, 0
      %v344 = vsel %vm339, %v321, 0
      %v347 = vsel %vm339, %v322, 0
      %v350 = vsel %vm339, %v323, 0
      %v353 = vsel %vm339, %v324, 0
      %v356 = vsel %vm339, %v325, 0
      %v359 = vsel %vm339, %v326, 0
      %v362 = vsel %vm339, %v327, 0
      %364 = vmatprep.subr.mxu0 0.0
      %365 = vmatpush1.msra.mxu0 0.0
      %366 = vmatprep.subr.mxu0 0.0
      %367 = vmatpush1.msra.mxu0 0.0
      %368 = vmatprep.subr.mxu0 0.0
      %369 = vmatpush1.msra.mxu0 0.0
      %370 = vmatprep.subr.mxu0 0.0
      %371 = vmatpush1.msra.mxu0 0.0
      %372 = vmatprep.subr.mxu0 0.0
      %373 = vmatpush1.msra.mxu0 0.0
      %374 = vmatprep.subr.mxu0 0.0
      %375 = vmatpush1.msra.mxu0 0.0
      %376 = vmatprep.subr.mxu0 0.0
      %377 = vmatpush1.msra.mxu0 0.0
      %378 = vmatprep.subr.mxu0 0.0
      %379 = vmatpush1.msra.mxu0 0.0
      %380 = vmatprep.subr.mxu0 0.0
      %381 = vmatpush1.msra.mxu0 0.0
      %382 = vmatprep.subr.mxu0 0.0
      %383 = vmatpush1.msra.mxu0 0.0
      %384 = vmatprep.subr.mxu0 0.0
      %385 = vmatpush1.msra.mxu0 0.0
      %386 = vmatprep.subr.mxu0 0.0
      %387 = vmatpush1.msra.mxu0 0.0
      %388 = vmatprep.subr.mxu0 0.0
      %389 = vmatpush1.msra.mxu0 %v331
      %390 = vmatprep.subr.mxu0 0.0
      %391 = vmatpush1.msra.mxu0 %v330
      %392 = vmatprep.subr.mxu0 0.0
      %393 = vmatpush1.msra.mxu0 %v329
      %394 = vmatprep.subr.mxu0 0.0
      %395 = vmatpush1.msra.mxu0 %v328
      %396 = vmatprep.subr.mxu0 0.0
      %397 = vmatpush2.msra.mxu0 0.0
      %398 = vmatprep.subr.mxu0 0.0
      %399 = vmatpush2.msra.mxu0 0.0
      %400 = vmatprep.subr.mxu0 0.0
      %401 = vmatpush2.msra.mxu0 0.0
      %402 = vmatprep.subr.mxu0 0.0
      %403 = vmatpush2.msra.mxu0 0.0
      %404 = vmatprep.subr.mxu0 0.0
      %405 = vmatpush2.msra.mxu0 0.0
      %406 = vmatprep.subr.mxu0 0.0
      %407 = vmatpush2.msra.mxu0 0.0
      %408 = vmatprep.subr.mxu0 0.0
      %409 = vmatpush2.msra.mxu0 0.0
      %410 = vmatprep.subr.mxu0 0.0
      %411 = vmatpush2.msra.mxu0 0.0
      %412 = vmatprep.subr.mxu0 0.0
      %413 = vmatpush2.msra.mxu0 0.0
      %414 = vmatprep.subr.mxu0 0.0
      %415 = vmatpush2.msra.mxu0 0.0
      %416 = vmatprep.subr.mxu0 0.0
      %417 = vmatpush2.msra.mxu0 0.0
      %418 = vmatprep.subr.mxu0 0.0
      %419 = vmatpush2.msra.mxu0 0.0
      %420 = vmatprep.subr.mxu0 0.0
      %421 = vmatpush2.msra.mxu0 0.0
      %422 = vmatprep.subr.mxu0 0.0
      %423 = vmatpush2.msra.mxu0 0.0
      %424 = vmatprep.subr.mxu0 0.0
      %425 = vmatpush2.msra.mxu0 0.0
      %426 = vmatprep.subr.mxu0 0.0
      %427 = vmatpush2.msra.mxu0 0.0
      %428 = vmatprep.mubr.f32.mxu0 0.0
      %429 = vmatmul.mubr.f32.gmra.mxu0 %v341
      %v430 = vpop.f32.mrf.mxu0
      %v431 = vadd.f32 %v337, %v430
      %v432 = vpop.f32.mrf.mxu0
      %433 = vmatprep.mubr.f32.mxu0 0.0
      %434 = vmatmul.mubr.f32.gmra.mxu0 %v344
      %v435 = vpop.f32.mrf.mxu0
      %v436 = vadd.f32 %v337, %v435
      %v437 = vpop.f32.mrf.mxu0
      %438 = vmatprep.mubr.f32.mxu0 0.0
      %439 = vmatmul.mubr.f32.gmra.mxu0 %v347
      %v440 = vpop.f32.mrf.mxu0
      %v441 = vadd.f32 %v337, %v440
      %v442 = vpop.f32.mrf.mxu0
      %443 = vmatprep.mubr.f32.mxu0 0.0
      %444 = vmatmul.mubr.f32.gmra.mxu0 %v350
      %v445 = vpop.f32.mrf.mxu0
      %v446 = vadd.f32 %v337, %v445
      %v447 = vpop.f32.mrf.mxu0
      %448 = vmatprep.mubr.f32.mxu0 0.0
      %449 = vmatmul.mubr.f32.gmra.mxu0 %v353
      %v450 = vpop.f32.mrf.mxu0
      %v451 = vadd.f32 %v337, %v450
      %v452 = vpop.f32.mrf.mxu0
      %453 = vmatprep.mubr.f32.mxu0 0.0
      %454 = vmatmul.mubr.f32.gmra.mxu0 %v356
      %v455 = vpop.f32.mrf.mxu0
      %v456 = vadd.f32 %v337, %v455
      %v457 = vpop.f32.mrf.mxu0
      %458 = vmatprep.mubr.f32.mxu0 0.0
      %459 = vmatmul.mubr.f32.gmra.mxu0 %v359
      %v460 = vpop.f32.mrf.mxu0
      %v461 = vadd.f32 %v337, %v460
      %v462 = vpop.f32.mrf.mxu0
      %463 = vmatprep.mubr.f32.mxu0 0.0
      %464 = vmatmul.mubr.f32.gmra.mxu0 %v362
      %v465 = vpop.f32.mrf.mxu0
      %v466 = vadd.f32 %v337, %v465
      %v467 = vpop.f32.mrf.mxu0
      %468 = vdwg.mxu0
      %vm469 = vcmask 64512
      %470 = vst.msk [vmem:[%s293] sm:$0xff] %vm469, %v431
      %471 = vst.msk [vmem:[%s293 + $0x8] sm:$0xff] %vm469, %v436
      %472 = vst.msk [vmem:[%s293 + $0x10] sm:$0xff] %vm469, %v441
      %473 = vst.msk [vmem:[%s293 + $0x18] sm:$0xff] %vm469, %v446
      %474 = vst.msk [vmem:[%s293 + $0x20] sm:$0xff] %vm469, %v451
      %475 = vst.msk [vmem:[%s293 + $0x28] sm:$0xff] %vm469, %v456
      %476 = vst.msk [vmem:[%s293 + $0x30] sm:$0xff] %vm469, %v461
      %477 = vst.msk [vmem:[%s293 + $0x38] sm:$0xff] %vm469, %v466
      %486 = vrot.lane.b32.xlu0 %v431, 96
      %v487 = vpop.permute.xlu0 %486
      %488 = vrot.lane.b32.xlu0 %v436, 96
      %v489 = vpop.permute.xlu0 %488
      %490 = vrot.lane.b32.xlu0 %v441, 96
      %v491 = vpop.permute.xlu0 %490
      %492 = vrot.lane.b32.xlu0 %v446, 96
      %v493 = vpop.permute.xlu0 %492
      %494 = vrot.lane.b32.xlu0 %v451, 96
      %v495 = vpop.permute.xlu0 %494
      %496 = vrot.lane.b32.xlu0 %v456, 96
      %v497 = vpop.permute.xlu0 %496
      %498 = vrot.lane.b32.xlu0 %v461, 96
      %v499 = vpop.permute.xlu0 %498
      %500 = vrot.lane.b32.xlu0 %v466, 96
      %v501 = vpop.permute.xlu0 %500
      %510 = vst.msk [vmem:[%s305] sm:$0xff] %vm469, %v487
      %511 = vst.msk [vmem:[%s305 + $0x8] sm:$0xff] %vm469, %v489
      %512 = vst.msk [vmem:[%s305 + $0x10] sm:$0xff] %vm469, %v491
      %513 = vst.msk [vmem:[%s305 + $0x18] sm:$0xff] %vm469, %v493
      %514 = vst.msk [vmem:[%s305 + $0x20] sm:$0xff] %vm469, %v495
      %515 = vst.msk [vmem:[%s305 + $0x28] sm:$0xff] %vm469, %v497
      %516 = vst.msk [vmem:[%s305 + $0x30] sm:$0xff] %vm469, %v499
      %517 = vst.msk [vmem:[%s305 + $0x38] sm:$0xff] %vm469, %v501
      %518 = vrot.lane.b32.xlu0 %v431, 64
      %v519 = vpop.permute.xlu0 %518
      %520 = vrot.lane.b32.xlu0 %v436, 64
      %v521 = vpop.permute.xlu0 %520
      %522 = vrot.lane.b32.xlu0 %v441, 64
      %v523 = vpop.permute.xlu0 %522
      %524 = vrot.lane.b32.xlu0 %v446, 64
      %v525 = vpop.permute.xlu0 %524
      %526 = vrot.lane.b32.xlu0 %v451, 64
      %v527 = vpop.permute.xlu0 %526
      %528 = vrot.lane.b32.xlu0 %v456, 64
      %v529 = vpop.permute.xlu0 %528
      %530 = vrot.lane.b32.xlu0 %v461, 64
      %v531 = vpop.permute.xlu0 %530
      %532 = vrot.lane.b32.xlu0 %v466, 64
      %v533 = vpop.permute.xlu0 %532
      %542 = vst.msk [vmem:[%s317] sm:$0xff] %vm469, %v519
      %543 = vst.msk [vmem:[%s317 + $0x8] sm:$0xff] %vm469, %v521
      %544 = vst.msk [vmem:[%s317 + $0x10] sm:$0xff] %vm469, %v523
      %545 = vst.msk [vmem:[%s317 + $0x18] sm:$0xff] %vm469, %v525
      %546 = vst.msk [vmem:[%s317 + $0x20] sm:$0xff] %vm469, %v527
      %547 = vst.msk [vmem:[%s317 + $0x28] sm:$0xff] %vm469, %v529
      %548 = vst.msk [vmem:[%s317 + $0x30] sm:$0xff] %vm469, %v531
      %549 = vst.msk [vmem:[%s317 + $0x38] sm:$0xff] %vm469, %v533
      %550 = vrot.lane.b32.xlu0 %v431, 120
      %v551 = vpop.permute.xlu0 %550
      %552 = vrot.lane.b32.xlu0 %v436, 120
      %v553 = vpop.permute.xlu0 %552
      %554 = vrot.lane.b32.xlu0 %v441, 120
      %v555 = vpop.permute.xlu0 %554
      %556 = vrot.lane.b32.xlu0 %v446, 120
      %v557 = vpop.permute.xlu0 %556
      %558 = vrot.lane.b32.xlu0 %v451, 120
      %v559 = vpop.permute.xlu0 %558
      %560 = vrot.lane.b32.xlu0 %v456, 120
      %v561 = vpop.permute.xlu0 %560
      %562 = vrot.lane.b32.xlu0 %v461, 120
      %v563 = vpop.permute.xlu0 %562
      %564 = vrot.lane.b32.xlu0 %v466, 120
      %v565 = vpop.permute.xlu0 %564
      %s574 = scalar_lea.vmem %s293, 64
      %575 = vst.msk [vmem:[%s574] sm:$0xff] %vm469, %v551
      %576 = vst.msk [vmem:[%s574 + $0x8] sm:$0xff] %vm469, %v553
      %577 = vst.msk [vmem:[%s574 + $0x10] sm:$0xff] %vm469, %v555
      %578 = vst.msk [vmem:[%s574 + $0x18] sm:$0xff] %vm469, %v557
      %579 = vst.msk [vmem:[%s574 + $0x20] sm:$0xff] %vm469, %v559
      %580 = vst.msk [vmem:[%s574 + $0x28] sm:$0xff] %vm469, %v561
      %581 = vst.msk [vmem:[%s574 + $0x30] sm:$0xff] %vm469, %v563
      %582 = vst.msk [vmem:[%s574 + $0x38] sm:$0xff] %vm469, %v565
      %583 = vrot.lane.b32.xlu0 %v431, 88
      %v584 = vpop.permute.xlu0 %583
      %585 = vrot.lane.b32.xlu0 %v436, 88
      %v586 = vpop.permute.xlu0 %585
      %587 = vrot.lane.b32.xlu0 %v441, 88
      %v588 = vpop.permute.xlu0 %587
      %589 = vrot.lane.b32.xlu0 %v446, 88
      %v590 = vpop.permute.xlu0 %589
      %591 = vrot.lane.b32.xlu0 %v451, 88
      %v592 = vpop.permute.xlu0 %591
      %593 = vrot.lane.b32.xlu0 %v456, 88
      %v594 = vpop.permute.xlu0 %593
      %595 = vrot.lane.b32.xlu0 %v461, 88
      %v596 = vpop.permute.xlu0 %595
      %597 = vrot.lane.b32.xlu0 %v466, 88
      %v598 = vpop.permute.xlu0 %597
      %s607 = scalar_lea.vmem %s305, 64
      %608 = vst.msk [vmem:[%s607] sm:$0xff] %vm469, %v584
      %609 = vst.msk [vmem:[%s607 + $0x8] sm:$0xff] %vm469, %v586
      %610 = vst.msk [vmem:[%s607 + $0x10] sm:$0xff] %vm469, %v588
      %611 = vst.msk [vmem:[%s607 + $0x18] sm:$0xff] %vm469, %v590
      %612 = vst.msk [vmem:[%s607 + $0x20] sm:$0xff] %vm469, %v592
      %613 = vst.msk [vmem:[%s607 + $0x28] sm:$0xff] %vm469, %v594
      %614 = vst.msk [vmem:[%s607 + $0x30] sm:$0xff] %vm469, %v596
      %615 = vst.msk [vmem:[%s607 + $0x38] sm:$0xff] %vm469, %v598
      %616 = vrot.lane.b32.xlu0 %v431, 56
      %v617 = vpop.permute.xlu0 %616
      %618 = vrot.lane.b32.xlu0 %v436, 56
      %v619 = vpop.permute.xlu0 %618
      %620 = vrot.lane.b32.xlu0 %v441, 56
      %v621 = vpop.permute.xlu0 %620
      %622 = vrot.lane.b32.xlu0 %v446, 56
      %v623 = vpop.permute.xlu0 %622
      %624 = vrot.lane.b32.xlu0 %v451, 56
      %v625 = vpop.permute.xlu0 %624
      %626 = vrot.lane.b32.xlu0 %v456, 56
      %v627 = vpop.permute.xlu0 %626
      %628 = vrot.lane.b32.xlu0 %v461, 56
      %v629 = vpop.permute.xlu0 %628
      %630 = vrot.lane.b32.xlu0 %v466, 56
      %v631 = vpop.permute.xlu0 %630
      %s640 = scalar_lea.vmem %s317, 64
      %641 = vst.msk [vmem:[%s640] sm:$0xff] %vm469, %v617
      %642 = vst.msk [vmem:[%s640 + $0x8] sm:$0xff] %vm469, %v619
      %643 = vst.msk [vmem:[%s640 + $0x10] sm:$0xff] %vm469, %v621
      %644 = vst.msk [vmem:[%s640 + $0x18] sm:$0xff] %vm469, %v623
      %645 = vst.msk [vmem:[%s640 + $0x20] sm:$0xff] %vm469, %v625
      %646 = vst.msk [vmem:[%s640 + $0x28] sm:$0xff] %vm469, %v627
      %647 = vst.msk [vmem:[%s640 + $0x30] sm:$0xff] %vm469, %v629
      %648 = vst.msk [vmem:[%s640 + $0x38] sm:$0xff] %vm469, %v631
      %649 = vrot.lane.b32.xlu0 %v431, 112
      %v650 = vpop.permute.xlu0 %649
      %651 = vrot.lane.b32.xlu0 %v436, 112
      %v652 = vpop.permute.xlu0 %651
      %653 = vrot.lane.b32.xlu0 %v441, 112
      %v654 = vpop.permute.xlu0 %653
      %655 = vrot.lane.b32.xlu0 %v446, 112
      %v656 = vpop.permute.xlu0 %655
      %657 = vrot.lane.b32.xlu0 %v451, 112
      %v658 = vpop.permute.xlu0 %657
      %659 = vrot.lane.b32.xlu0 %v456, 112
      %v660 = vpop.permute.xlu0 %659
      %661 = vrot.lane.b32.xlu0 %v461, 112
      %v662 = vpop.permute.xlu0 %661
      %663 = vrot.lane.b32.xlu0 %v466, 112
      %v664 = vpop.permute.xlu0 %663
      %s673 = scalar_lea.vmem %s293, 128
      %674 = vst.msk [vmem:[%s673] sm:$0xff] %vm469, %v650
      %675 = vst.msk [vmem:[%s673 + $0x8] sm:$0xff] %vm469, %v652
      %676 = vst.msk [vmem:[%s673 + $0x10] sm:$0xff] %vm469, %v654
      %677 = vst.msk [vmem:[%s673 + $0x18] sm:$0xff] %vm469, %v656
      %678 = vst.msk [vmem:[%s673 + $0x20] sm:$0xff] %vm469, %v658
      %679 = vst.msk [vmem:[%s673 + $0x28] sm:$0xff] %vm469, %v660
      %680 = vst.msk [vmem:[%s673 + $0x30] sm:$0xff] %vm469, %v662
      %681 = vst.msk [vmem:[%s673 + $0x38] sm:$0xff] %vm469, %v664
      %682 = vrot.lane.b32.xlu0 %v431, 80
      %v683 = vpop.permute.xlu0 %682
      %684 = vrot.lane.b32.xlu0 %v436, 80
      %v685 = vpop.permute.xlu0 %684
      %686 = vrot.lane.b32.xlu0 %v441, 80
      %v687 = vpop.permute.xlu0 %686
      %688 = vrot.lane.b32.xlu0 %v446, 80
      %v689 = vpop.permute.xlu0 %688
      %690 = vrot.lane.b32.xlu0 %v451, 80
      %v691 = vpop.permute.xlu0 %690
      %692 = vrot.lane.b32.xlu0 %v456, 80
      %v693 = vpop.permute.xlu0 %692
      %694 = vrot.lane.b32.xlu0 %v461, 80
      %v695 = vpop.permute.xlu0 %694
      %696 = vrot.lane.b32.xlu0 %v466, 80
      %v697 = vpop.permute.xlu0 %696
      %s706 = scalar_lea.vmem %s305, 128
      %707 = vst.msk [vmem:[%s706] sm:$0xff] %vm469, %v683
      %708 = vst.msk [vmem:[%s706 + $0x8] sm:$0xff] %vm469, %v685
      %709 = vst.msk [vmem:[%s706 + $0x10] sm:$0xff] %vm469, %v687
      %710 = vst.msk [vmem:[%s706 + $0x18] sm:$0xff] %vm469, %v689
      %711 = vst.msk [vmem:[%s706 + $0x20] sm:$0xff] %vm469, %v691
      %712 = vst.msk [vmem:[%s706 + $0x28] sm:$0xff] %vm469, %v693
      %713 = vst.msk [vmem:[%s706 + $0x30] sm:$0xff] %vm469, %v695
      %714 = vst.msk [vmem:[%s706 + $0x38] sm:$0xff] %vm469, %v697
      %715 = vrot.lane.b32.xlu0 %v431, 48
      %v716 = vpop.permute.xlu0 %715
      %717 = vrot.lane.b32.xlu0 %v436, 48
      %v718 = vpop.permute.xlu0 %717
      %719 = vrot.lane.b32.xlu0 %v441, 48
      %v720 = vpop.permute.xlu0 %719
      %721 = vrot.lane.b32.xlu0 %v446, 48
      %v722 = vpop.permute.xlu0 %721
      %723 = vrot.lane.b32.xlu0 %v451, 48
      %v724 = vpop.permute.xlu0 %723
      %725 = vrot.lane.b32.xlu0 %v456, 48
      %v726 = vpop.permute.xlu0 %725
      %727 = vrot.lane.b32.xlu0 %v461, 48
      %v728 = vpop.permute.xlu0 %727
      %729 = vrot.lane.b32.xlu0 %v466, 48
      %v730 = vpop.permute.xlu0 %729
      %s739 = scalar_lea.vmem %s317, 128
      %740 = vst.msk [vmem:[%s739] sm:$0xff] %vm469, %v716
      %741 = vst.msk [vmem:[%s739 + $0x8] sm:$0xff] %vm469, %v718
      %742 = vst.msk [vmem:[%s739 + $0x10] sm:$0xff] %vm469, %v720
      %743 = vst.msk [vmem:[%s739 + $0x18] sm:$0xff] %vm469, %v722
      %744 = vst.msk [vmem:[%s739 + $0x20] sm:$0xff] %vm469, %v724
      %745 = vst.msk [vmem:[%s739 + $0x28] sm:$0xff] %vm469, %v726
      %746 = vst.msk [vmem:[%s739 + $0x30] sm:$0xff] %vm469, %v728
      %747 = vst.msk [vmem:[%s739 + $0x38] sm:$0xff] %vm469, %v730
      %748 = vrot.lane.b32.xlu0 %v431, 104
      %v749 = vpop.permute.xlu0 %748
      %750 = vrot.lane.b32.xlu0 %v436, 104
      %v751 = vpop.permute.xlu0 %750
      %752 = vrot.lane.b32.xlu0 %v441, 104
      %v753 = vpop.permute.xlu0 %752
      %754 = vrot.lane.b32.xlu0 %v446, 104
      %v755 = vpop.permute.xlu0 %754
      %756 = vrot.lane.b32.xlu0 %v451, 104
      %v757 = vpop.permute.xlu0 %756
      %758 = vrot.lane.b32.xlu0 %v456, 104
      %v759 = vpop.permute.xlu0 %758
      %760 = vrot.lane.b32.xlu0 %v461, 104
      %v761 = vpop.permute.xlu0 %760
      %762 = vrot.lane.b32.xlu0 %v466, 104
      %v763 = vpop.permute.xlu0 %762
      %s772 = scalar_lea.vmem %s293, 192
      %773 = vst.msk [vmem:[%s772] sm:$0xff] %vm469, %v749
      %774 = vst.msk [vmem:[%s772 + $0x8] sm:$0xff] %vm469, %v751
      %775 = vst.msk [vmem:[%s772 + $0x10] sm:$0xff] %vm469, %v753
      %776 = vst.msk [vmem:[%s772 + $0x18] sm:$0xff] %vm469, %v755
      %777 = vst.msk [vmem:[%s772 + $0x20] sm:$0xff] %vm469, %v757
      %778 = vst.msk [vmem:[%s772 + $0x28] sm:$0xff] %vm469, %v759
      %779 = vst.msk [vmem:[%s772 + $0x30] sm:$0xff] %vm469, %v761
      %780 = vst.msk [vmem:[%s772 + $0x38] sm:$0xff] %vm469, %v763
      %781 = vrot.lane.b32.xlu0 %v431, 72
      %v782 = vpop.permute.xlu0 %781
      %783 = vrot.lane.b32.xlu0 %v436, 72
      %v784 = vpop.permute.xlu0 %783
      %785 = vrot.lane.b32.xlu0 %v441, 72
      %v786 = vpop.permute.xlu0 %785
      %787 = vrot.lane.b32.xlu0 %v446, 72
      %v788 = vpop.permute.xlu0 %787
      %789 = vrot.lane.b32.xlu0 %v451, 72
      %v790 = vpop.permute.xlu0 %789
      %791 = vrot.lane.b32.xlu0 %v456, 72
      %v792 = vpop.permute.xlu0 %791
      %793 = vrot.lane.b32.xlu0 %v461, 72
      %v794 = vpop.permute.xlu0 %793
      %795 = vrot.lane.b32.xlu0 %v466, 72
      %v796 = vpop.permute.xlu0 %795
      %s805 = scalar_lea.vmem %s305, 192
      %806 = vst.msk [vmem:[%s805] sm:$0xff] %vm469, %v782
      %807 = vst.msk [vmem:[%s805 + $0x8] sm:$0xff] %vm469, %v784
      %808 = vst.msk [vmem:[%s805 + $0x10] sm:$0xff] %vm469, %v786
      %809 = vst.msk [vmem:[%s805 + $0x18] sm:$0xff] %vm469, %v788
      %810 = vst.msk [vmem:[%s805 + $0x20] sm:$0xff] %vm469, %v790
      %811 = vst.msk [vmem:[%s805 + $0x28] sm:$0xff] %vm469, %v792
      %812 = vst.msk [vmem:[%s805 + $0x30] sm:$0xff] %vm469, %v794
      %813 = vst.msk [vmem:[%s805 + $0x38] sm:$0xff] %vm469, %v796
      %814 = vrot.lane.b32.xlu0 %v431, 40
      %v815 = vpop.permute.xlu0 %814
      %816 = vrot.lane.b32.xlu0 %v436, 40
      %v817 = vpop.permute.xlu0 %816
      %818 = vrot.lane.b32.xlu0 %v441, 40
      %v819 = vpop.permute.xlu0 %818
      %820 = vrot.lane.b32.xlu0 %v446, 40
      %v821 = vpop.permute.xlu0 %820
      %822 = vrot.lane.b32.xlu0 %v451, 40
      %v823 = vpop.permute.xlu0 %822
      %824 = vrot.lane.b32.xlu0 %v456, 40
      %v825 = vpop.permute.xlu0 %824
      %826 = vrot.lane.b32.xlu0 %v461, 40
      %v827 = vpop.permute.xlu0 %826
      %828 = vrot.lane.b32.xlu0 %v466, 40
      %v829 = vpop.permute.xlu0 %828
      %s838 = scalar_lea.vmem %s317, 192
      %839 = vst.msk [vmem:[%s838] sm:$0xff] %vm469, %v815
      %840 = vst.msk [vmem:[%s838 + $0x8] sm:$0xff] %vm469, %v817
      %841 = vst.msk [vmem:[%s838 + $0x10] sm:$0xff] %vm469, %v819
      %842 = vst.msk [vmem:[%s838 + $0x18] sm:$0xff] %vm469, %v821
      %843 = vst.msk [vmem:[%s838 + $0x20] sm:$0xff] %vm469, %v823
      %844 = vst.msk [vmem:[%s838 + $0x28] sm:$0xff] %vm469, %v825
      %845 = vst.msk [vmem:[%s838 + $0x30] sm:$0xff] %vm469, %v827
      %846 = vst.msk [vmem:[%s838 + $0x38] sm:$0xff] %vm469, %v829
      %s847 = smul.u32 4, %s21
      %s848 = smul.u32 8, %s22
      %p849 = scmp.lt.s32.totalorder %s847, 7
      %s850 = scalar_select %p849, %s847, 7
      %p851 = scmp.lt.s32.totalorder %s848, 7
      %s852 = scalar_select %p851, %s848, 7
      %s853 = smul.addr %s850, 8
      %s854 = sadd.s32 %s852, %s853
      %s855 = smul.addr %s854, 8
      %s856 = scalar_lea.vmem %s3, %s855
      %s857 = smul.u32 4, %s21
      %s858 = smul.u32 8, %s22
      %p859 = scmp.lt.s32.totalorder %s857, 7
      %s860 = scalar_select %p859, %s857, 7
      %p861 = scmp.lt.s32.totalorder %s858, 7
      %s862 = scalar_select %p861, %s858, 7
      %s863 = smul.addr %s860, 8
      %s864 = sadd.s32 %s862, %s863
      %s865 = smul.addr %s864, 8
      %s866 = scalar_lea.vmem %s4, %s865
      %s867 = smul.u32 4, %s21
      %s868 = smul.u32 8, %s22
      %p869 = scmp.lt.s32.totalorder %s867, 7
      %s870 = scalar_select %p869, %s867, 7
      %p871 = scmp.lt.s32.totalorder %s868, 7
      %s872 = scalar_select %p871, %s868, 7
      %s873 = smul.addr %s870, 8
      %s874 = sadd.s32 %s872, %s873
      %s875 = smul.addr %s874, 8
      %s876 = scalar_lea.vmem %s5, %s875
      // Predicated region
      $region33: #{tpu_custom_call.1} parent=31 // pred_check
        %p877 = pneg %p119
      $region34: #{tpu_custom_call.1} parent=31 // pred_check_branch
        %879 = sbr.rel (%p877) target = $region36
      $region35: #{tpu_custom_call.1} parent=31 // pred_region
        %s880 = smul.u32 4, %s21
        %s881 = smul.u32 8, %s22
      $region36: #{tpu_custom_call.1} parent=31 // pred_fallthru
        _
      // Predicated region
      $region37: #{tpu_custom_call.1} parent=31 // pred_check
        %p882 = pneg %p147
      $region38: #{tpu_custom_call.1} parent=31 // pred_check_branch
        %884 = sbr.rel (%p882) target = $region40
      $region39: #{tpu_custom_call.1} parent=31 // pred_region
        %s885 = smul.u32 4, %s21
        %s886 = smul.u32 8, %s22
      $region40: #{tpu_custom_call.1} parent=31 // pred_fallthru
        _
      // Predicated region
      $region41: #{tpu_custom_call.1} parent=31 // pred_check
        %p887 = pneg %p175
      $region42: #{tpu_custom_call.1} parent=31 // pred_check_branch
        %889 = sbr.rel (%p887) target = $region44
      $region43: #{tpu_custom_call.1} parent=31 // pred_region
        %s890 = smul.u32 4, %s21
        %s891 = smul.u32 8, %s22
      $region44: #{tpu_custom_call.1} parent=31 // pred_fallthru
        _
    $region32: #{tpu_custom_call.1} parent=5 // pred_fallthru
      _
    %p892 = scmp.le.s32.totalorder 2, %s12
    // Predicated region
    $region45: #{tpu_custom_call.1} parent=5 // pred_check
      %p893 = pneg %p892
    $region46: #{tpu_custom_call.1} parent=5 // pred_check_branch
      %895 = sbr.rel (%p893) target = $region48
    $region47: #{tpu_custom_call.1} parent=5 // pred_region
      %s896 = ssub.s32 %s12, 2
      // Predicated region
      $region49: #{tpu_custom_call.1} parent=47 // pred_check
        %p897 = pneg %p125
      $region50: #{tpu_custom_call.1} parent=47 // pred_check_branch
        %899 = sbr.rel (%p897) target = $region52
      $region51: #{tpu_custom_call.1} parent=47 // pred_region
        %s900 = smul.u32 4, %s23
        %s901 = smul.u32 8, %s24
        %p902 = scmp.lt.s32.totalorder %s900, 7
        %s903 = scalar_select %p902, %s900, 7
        %p904 = scmp.lt.s32.totalorder %s901, 7
        %s905 = scalar_select %p904, %s901, 7
        %s906 = smul.addr %s903, 8
        %s907 = sadd.s32 %s905, %s906
        %s908 = smul.addr %s907, 8
        %s909 = scalar_lea.vmem %s3, %s908
      $region52: #{tpu_custom_call.1} parent=47 // pred_fallthru
        _
      // Predicated region
      $region53: #{tpu_custom_call.1} parent=47 // pred_check
        %p910 = pneg %p153
      $region54: #{tpu_custom_call.1} parent=47 // pred_check_branch
        %912 = sbr.rel (%p910) target = $region56
      $region55: #{tpu_custom_call.1} parent=47 // pred_region
        %s913 = smul.u32 4, %s23
        %s914 = smul.u32 8, %s24
        %p915 = scmp.lt.s32.totalorder %s913, 7
        %s916 = scalar_select %p915, %s913, 7
        %p917 = scmp.lt.s32.totalorder %s914, 7
        %s918 = scalar_select %p917, %s914, 7
        %s919 = smul.addr %s916, 8
        %s920 = sadd.s32 %s918, %s919
        %s921 = smul.addr %s920, 8
        %s922 = scalar_lea.vmem %s4, %s921
      $region56: #{tpu_custom_call.1} parent=47 // pred_fallthru
        _
      // Predicated region
      $region57: #{tpu_custom_call.1} parent=47 // pred_check
        %p923 = pneg %p181
      $region58: #{tpu_custom_call.1} parent=47 // pred_check_branch
        %925 = sbr.rel (%p923) target = $region60
      $region59: #{tpu_custom_call.1} parent=47 // pred_region
        %s926 = smul.u32 4, %s23
        %s927 = smul.u32 8, %s24
        %p928 = scmp.lt.s32.totalorder %s926, 7
        %s929 = scalar_select %p928, %s926, 7
        %p930 = scmp.lt.s32.totalorder %s927, 7
        %s931 = scalar_select %p930, %s927, 7
        %s932 = smul.addr %s929, 8
        %s933 = sadd.s32 %s931, %s932
        %s934 = smul.addr %s933, 8
        %s935 = scalar_lea.vmem %s5, %s934
      $region60: #{tpu_custom_call.1} parent=47 // pred_fallthru
        _
    $region48: #{tpu_custom_call.1} parent=5 // pred_fallthru
      _
  $region6: #{tpu_custom_call.1} parent=0 // loop_footer
    %s16 = sadd.s32 1, %s12
  $region7: #{tpu_custom_call.1} parent=0 // loop_footer_branch
    %11 = sbr.rel target = $region3
  $region8: #{tpu_custom_call.1} parent=0 // loop_exit
    _

</llo_original>
